<compile_context>
chip_gen: v7x
topology: tpu7x:2x2x1
jax: 0.10.0
libtpu: 0.0.40
codegen_flags: <defaults>
</compile_context>

<pallas_src>
import functools

import jax
import jax.numpy as jnp
import numpy as np
from jax import lax
from jax.experimental import pallas as pl
from jax.experimental.pallas import tpu as pltpu


def _round_up(x, m):
    return (x + m - 1) // m * m


def _silu(x):
    # Exact SiLU: x * sigmoid(x).  exp() runs on the EUP; the divide is exact so the
    # kernel matches the PyTorch reference up to bf16 matmul rounding only.
    return x / (1.0 + jnp.exp(-x))


@functools.lru_cache(maxsize=None)
def _roll_is_numpy_convention():
    """True iff pltpu.roll(x, s, axis) matches np.roll (out[i] = in[i - s]).

    One tiny lru-cached probe per process (review item #13: could be hardcoded once
    the jax release is pinned; kept here so the kernel is correct on any version).
    """
    def kern(x_ref, o_ref):
        o_ref[...] = pltpu.roll(x_ref[...], 1, 0)

    x = jnp.arange(8 * 128, dtype=jnp.float32).reshape(8, 128)
    y = pl.pallas_call(kern, out_shape=jax.ShapeDtypeStruct((8, 128), jnp.float32))(x)
    return bool(np.asarray(y[0, 0]) == np.asarray(x[7, 0]))


def _bottleneck_kernel(x_ref, w1_ref, b1_ref, w2_ref, b2_ref, o_ref, *,
                       k, tile_h, H, W, add, np_roll):
    # Block shapes:
    #   x_ref : (1, 1, tile_h + 2p, Wp, C1p)  f32, halo'd H-tile (zero padded W/C)
    #   w1_ref: (C1p, Cp_) bf16     b1_ref: (1, Cp_)  f32   (BN folded into weights)
    #   w2_ref: (k*k*Cp_, C2p) bf16 (kj-major, ki-minor tap order)
    #   b2_ref: (1, C2p) f32
    #   o_ref : (1, tile_h, Wp, C2p) f32
    p = k // 2
    t_ext = tile_h + 2 * p
    _, _, _, Wp, C1p = x_ref.shape
    Cp_ = w1_ref.shape[1]
    C2p = o_ref.shape[-1]
    nrows = t_ext * Wp
    npix = tile_h * Wp

    hi = pl.program_id(1)
    row0 = hi * tile_h                               # tile top row (padded coords)

    # ---------------- cv1: 1x1 conv (BN folded) + SiLU on tile + halo --------
    x_ext = x_ref[0, 0, :, :, :].reshape(nrows, C1p).astype(jnp.bfloat16)
    h1 = jnp.dot(x_ext, w1_ref[...],
                 preferred_element_type=jnp.float32) + b1_ref[...]
    h1 = _silu(h1)                                                  # (nrows, Cp_) f32

    # Flat-row index helpers (computed once per step).
    fidx = lax.broadcasted_iota(jnp.int32, (nrows, 1), 0)
    r_loc = fidx // Wp
    wcol = fidx - r_loc * Wp
    # Rows outside the real image act as cv2's zero padding -> zero them
    # (cv1 bias/SiLU makes padding rows nonzero otherwise).
    g_row = r_loc + row0
    row_ok = jnp.logical_and(g_row >= p, g_row < H + p)
    h1 = jnp.where(row_ok, h1, 0.0)

    # ---------------- cv2: kxk conv (BN folded) as ONE fused-K MXU matmul ----
    # A shift by dj along W on the flattened (rows*Wp, C) layout is a sublane roll
    # (XLU, f32 - proven lowering); cross-row / out-of-image wrap is killed by the
    # column mask.  Each shifted copy is built once (only one live at a time) and
    # cast to bf16 for the MXU.
    def shifted_w(dj):
        if dj == 0:
            src = h1
        else:
            s = ((-dj) if np_roll else dj) % nrows    # non-negative static shift
            rolled = pltpu.roll(h1, s, 0)
            ok = (wcol < (W - dj)) if dj > 0 else (wcol >= (-dj))
            src = jnp.where(ok, rolled, 0.0)
        return src.astype(jnp.bfloat16)

    # im2col slab (npix, k*k*Cp_), tap order (kj outer, ki inner) == w2_ref layout.
    parts = []
    for kj in range(k):
        col = shifted_w(kj - p)                       # (nrows, Cp_) bf16
        for ki in range(k):
            base = ki * Wp                            # sublane-aligned row slice
            parts.append(col[base:base + npix])
    slab = jnp.concatenate(parts, axis=-1)            # (npix, k*k*Cp_) bf16

    # Single long-K matmul (fills the 256-deep MXU on v6e/v7x); bias folded into
    # the same f32 accumulator expression -- no zero-init / extra VALU adds.
    y = jnp.dot(slab, w2_ref[...],
                preferred_element_type=jnp.float32) + b2_ref[...]
    y = _silu(y)                                      # (npix, C2p) f32

    # ---------------- optional residual shortcut (f32, exact) ----------------
    if add:
        x_tile = x_ref[0, 0, pl.ds(p, tile_h), :, :]  # (tile_h, Wp, C1p) f32
        y = y + x_tile.reshape(npix, C1p)

    o_ref[0] = y.reshape(tile_h, Wp, C2p)


def _fold_bn(gamma, beta, mean, var, eps=1e-5):
    scale = gamma / jnp.sqrt(var + eps)
    return scale, beta - mean * scale


def _prepare_kernel_params(params, k):
    """Fold BN into conv weights, pad channels to 128 lanes, cast weights to bf16."""
    w1 = params["w1"]                      # (c1, c_)
    w2 = params["w2"]                      # (k, k, c_, c2)  HWIO
    c1, c_ = w1.shape
    c2 = w2.shape[-1]
    s1, b1 = _fold_bn(*params["bn1"])
    s2, b2 = _fold_bn(*params["bn2"])
    w1f = w1 * s1[None, :]
    w2f = w2 * s2[None, None, None, :]

    C1p, Cp_, C2p = (_round_up(c, 128) for c in (c1, c_, c2))
    w1p = (jnp.zeros((C1p, Cp_), jnp.float32).at[:c1, :c_].set(w1f)
           .astype(jnp.bfloat16))
    b1p = jnp.zeros((1, Cp_), jnp.float32).at[0, :c_].set(b1)
    # Pad taps, reorder to (kj, ki, Cin, Cout) to match the kernel's im2col slab
    # order, then flatten the contraction dim to k*k*Cp_.
    w2pad = jnp.zeros((k, k, Cp_, C2p), jnp.float32).at[:, :, :c_, :c2].set(w2f)
    w2p = (jnp.transpose(w2pad, (1, 0, 2, 3)).reshape(k * k * Cp_, C2p)
           .astype(jnp.bfloat16))
    b2p = jnp.zeros((1, C2p), jnp.float32).at[0, :c2].set(b2)
    return (c1, c_, c2), (C1p, Cp_, C2p), (w1p, b1p, w2p, b2p)


def bottleneck(x_nchw, params, *, k=3, shortcut=True, tile_h=32):
    """Bottleneck forward. x_nchw: (N, c1, H, W) float32 -> (N, c2, H, W) float32."""
    N, c1, H, W = x_nchw.shape
    (c1_, c_, c2), (C1p, Cp_, C2p), (w1p, b1p, w2p, b2p) = _prepare_kernel_params(params, k)
    assert c1 == c1_
    add = bool(shortcut and c1 == c2)
    if add:
        assert C1p == C2p
    p = k // 2

    # Row tiling: grid = cdiv(H, th); H is padded up to a multiple of th and the
    # extra rows are masked in-kernel / sliced off (no degenerate 1-row tiles).
    th = max(1, min(tile_h, H))
    n_h = pl.cdiv(H, th)
    H_out = n_h * th
    t_ext = th + 2 * p
    Wp = _round_up(W, 8)
    Hp = H_out + 2 * p

    # NCHW -> NHWC; zero-pad H by the conv halo, W to a multiple of 8 (sublane),
    # channels to a multiple of 128 (lane).  Then gather overlapping (th + 2p)-row
    # windows so each grid step's x block is just its tile + halo (VMEM scales with
    # tile_h, not H -- important on v7x's 64 MiB VMEM at real YOLO resolutions).
    x = jnp.transpose(x_nchw, (0, 2, 3, 1)).astype(jnp.float32)
    canvas = jnp.zeros((N, Hp, Wp, C1p), jnp.float32).at[:, p:p + H, :W, :c1].set(x)
    row_idx = jnp.arange(n_h)[:, None] * th + jnp.arange(t_ext)[None, :]
    x_tiles = canvas[:, row_idx]                      # (N, n_h, t_ext, Wp, C1p)

    # VMEM budget: ~2x (blocks + in-kernel temporaries), clamped to [32, 96] MiB.
    blk_bytes = (t_ext * Wp * C1p * 4                 # x tile (f32)
                 + C1p * Cp_ * 2 + k * k * Cp_ * C2p * 2   # bf16 weights
                 + (Cp_ + C2p) * 4                    # biases
                 + th * Wp * C2p * 4)                 # output tile (f32)
    tmp_bytes = (t_ext * Wp * Cp_ * (4 + 2)           # h1 f32 + one shifted bf16 col
                 + th * Wp * k * k * Cp_ * 2          # im2col slab (bf16)
                 + th * Wp * C2p * 4)                 # f32 accumulator / y
    vmem_limit = int(min(max(32 << 20, 2 * (blk_bytes + tmp_bytes)), 96 << 20))

    kernel = functools.partial(
        _bottleneck_kernel, k=k, tile_h=th, H=H, W=W, add=add,
        np_roll=_roll_is_numpy_convention())

    out = pl.pallas_call(
        kernel,
        out_shape=jax.ShapeDtypeStruct((N, H_out, Wp, C2p), jnp.float32),
        grid=(N, n_h),
        in_specs=[
            pl.BlockSpec((1, 1, t_ext, Wp, C1p), lambda n, h: (n, h, 0, 0, 0)),  # x tile
            pl.BlockSpec((C1p, Cp_), lambda n, h: (0, 0)),                       # w1 bf16
            pl.BlockSpec((1, Cp_), lambda n, h: (0, 0)),                         # b1
            pl.BlockSpec((k * k * Cp_, C2p), lambda n, h: (0, 0)),               # w2 bf16
            pl.BlockSpec((1, C2p), lambda n, h: (0, 0)),                         # b2
        ],
        out_specs=pl.BlockSpec((1, th, Wp, C2p), lambda n, h: (n, h, 0, 0)),
        compiler_params=pltpu.CompilerParams(
            dimension_semantics=("parallel", "parallel"),
            vmem_limit_bytes=vmem_limit),
    )(x_tiles, w1p, b1p, w2p, b2p)

    out = out[:, :H, :W, :c2]                     # strip H / W / channel padding
    return jnp.transpose(out, (0, 3, 1, 2))       # NHWC -> NCHW


def init_params(key, c1, c2, k=3, e=0.5):
    """Deterministic synthetic parameters (shapes from Bottleneck.__init__)."""
    c_ = int(c2 * e)
    ks = jax.random.split(key, 10)
    # torch cv1.conv.weight (c_, c1, 1, 1) -> (c1, c_); cv2.conv.weight (c2, c_, k, k) -> HWIO
    w1 = 0.3 * jax.random.normal(ks[0], (c1, c_), jnp.float32)
    w2 = 0.3 * jax.random.normal(ks[1], (k, k, c_, c2), jnp.float32)

    def bn(i, c):
        gamma = 1.0 + 0.1 * jax.random.normal(ks[i], (c,), jnp.float32)
        beta = 0.05 * jax.random.normal(ks[i + 1], (c,), jnp.float32)
        mean = 0.1 * jax.random.normal(ks[i + 2], (c,), jnp.float32)
        var = jax.random.uniform(ks[i + 3], (c,), jnp.float32, 0.5, 1.5)
        return gamma, beta, mean, var

    return dict(w1=w1, w2=w2, bn1=bn(2, c_), bn2=bn(6, c2))


def reference(x_nchw, params, *, k=3, shortcut=True, eps=1e-5):
    """Pure-JAX reference matching the PyTorch module in eval mode (f32)."""
    x = jnp.transpose(x_nchw, (0, 2, 3, 1)).astype(jnp.float32)
    c1 = x.shape[-1]
    c2 = params["w2"].shape[-1]

    def bn(y, stats):
        gamma, beta, mean, var = stats
        return (y - mean) * (gamma / jnp.sqrt(var + eps)) + beta

    h = jax.nn.silu(bn(jnp.einsum("nhwi,io->nhwo", x, params["w1"]), params["bn1"]))
    y = lax.conv_general_dilated(
        h, params["w2"], window_strides=(1, 1), padding="SAME",
        dimension_numbers=("NHWC", "HWIO", "NHWC"))
    y = jax.nn.silu(bn(y, params["bn2"]))
    if shortcut and c1 == c2:
        y = y + x
    return jnp.transpose(y, (0, 3, 1, 2))


if __name__ == "__main__":
    N, c1, H, W = 2, 4, 16, 16
    c2, k, shortcut = 4, 3, True          # Bottleneck(c1=4, c2=4, shortcut=True, e=0.5)

    key = jax.random.PRNGKey(0)
    kx, kp = jax.random.split(key)
    x = jax.random.normal(kx, (N, c1, H, W), jnp.float32)
    params = init_params(kp, c1, c2, k=k, e=0.5)

    y = jax.block_until_ready(bottleneck(x, params, k=k, shortcut=shortcut))
    y_ref = jax.block_until_ready(reference(x, params, k=k, shortcut=shortcut))

    assert y.shape == (N, c2, H, W)
    # Tolerance re-baselined for bf16 MXU operands (f32 accumulation, exact SiLU);
    # estimated worst-case error at these scales is ~1e-2.
    np.testing.assert_allclose(np.asarray(y), np.asarray(y_ref), rtol=3e-2, atol=3e-2)
    print("KERNEL_OK")
</pallas_src>

<mosaic_0001>
module attributes {stable_mosaic.version = 11 : i64} {
  func.func @kern(%arg0: memref<8x128xf32, #tpu.memory_space<vmem>>, %arg1: memref<8x128xf32, #tpu.memory_space<vmem>>) attributes {dimension_semantics = [], scalar_prefetch = 0 : i64, scratch_operands = 0 : i64, tpu.core_type = #tpu.core_type<tc>} {
    %c0 = arith.constant 0 : index
    %c0_0 = arith.constant 0 : index
    %0 = vector.load %arg0[%c0, %c0_0] : memref<8x128xf32, #tpu.memory_space<vmem>>, vector<8x128xf32>
    %c1_i32 = arith.constant 1 : i32
    %1 = tpu.dynamic_rotate %0 by %c1_i32 dim 0 : vector<8x128xf32>, i32 -> vector<8x128xf32>
    %c0_1 = arith.constant 0 : index
    %c0_2 = arith.constant 0 : index
    %2 = vector.load %arg1[%c0_1, %c0_2] : memref<8x128xf32, #tpu.memory_space<vmem>>, vector<8x128xf32>
    tpu.vector_store %arg1[%c0_1, %c0_2], %1 {strides = array<i32>} : memref<8x128xf32, #tpu.memory_space<vmem>>, vector<8x128xf32>,
    return
  }
}

</mosaic_0001>

<llo_original>
// kernel: tpu_custom_call.1
$region0: #{tpu_custom_call.1}
  #allocation0 [shape = 'u32[]', space=smem, size = 0x4, offset = 0x4, fixed_abs, tag = 'smem constant byte address 0x4 - core index']
  #allocation1 [shape = 'u32[144,128]{1,0:T(1,128)}', space=vmem, size = 0x12000, scoped, tag = 'internal scratch']
  %s0 = inlined_call_operand.hbm [shape: f32[8,128], index: 0, kind: input, shape index: {}]
  %s1 = inlined_call_operand.hbm [shape: f32[8,128], index: 1, kind: output, shape index: {}]
  %s2 = sld [smem:[#allocation0]]
  $region18: #{tpu_custom_call.1} parent=0
    _
  %s4 = ssub.s32 1, %s2
  %s5 = scalar_select 0, %s4, %s2
  $region1: #{tpu_custom_call.1} parent=0
    #allocation2 [shape = 'u8[4096]{0}', space=vmem, size = 0x1000, scoped, tag = 'input window, operand 0, single buffered']
    #allocation3 [shape = 's32[1]{0}', space=sflag, size = 0x4, scoped, tag = 'scoped memory for tpu_custom_call.1']
    #allocation4 [shape = 's32[1]{0}', space=sflag, size = 0x4, scoped, tag = 'scoped memory for tpu_custom_call.1']
    #allocation5 [shape = 'u8[4096]{0}', space=vmem, size = 0x1000, scoped, tag = 'output window, operand 0, single buffered']
    %6 = vsyncpa [#allocation3], 0
    %7 = vsyncpa [#allocation4], 0
    // Predicated region
    $region2: #{tpu_custom_call.1} parent=1 // pred_check
      _
    $region3: #{tpu_custom_call.1} parent=1 // pred_check_branch
      %9 = sbr.rel (0) target = $region5
    $region4: #{tpu_custom_call.1} parent=1 // pred_region
      %s11 = ssub.s32 128, 128
      %12 = vsyncadd [#allocation3], %s11
      %s14 = sshll.u32 [#allocation2], 4
      %s15 = int_to_ptr.vmem [resolvable:$true] %s14
      %17 = dma.hbm_to_vmem [thread:$0]  %s0, 128, %s15, [#allocation3]
    $region5: #{tpu_custom_call.1} parent=1 // pred_fallthru
      _
    // Predicated region
    $region6: #{tpu_custom_call.1} parent=1 // pred_check
      _
    $region7: #{tpu_custom_call.1} parent=1 // pred_check_branch
      %19 = sbr.rel (0) target = $region9
    $region8: #{tpu_custom_call.1} parent=1 // pred_region
      %20 = dma.done [#allocation3], 128
    $region9: #{tpu_custom_call.1} parent=1 // pred_fallthru
      _
    %v21 = vld [vmem:[#allocation2] sm:$0xff]
    %v22 = vrot.slane %v21, 7
    %23 = vst [vmem:[#allocation5] sm:$0xff] %v22
    // Predicated region
    $region10: #{tpu_custom_call.1} parent=1 // pred_check
      _
    $region11: #{tpu_custom_call.1} parent=1 // pred_check_branch
      %25 = sbr.rel (0) target = $region13
    $region12: #{tpu_custom_call.1} parent=1 // pred_region
      %s27 = ssub.s32 128, 128
      %28 = vsyncadd [#allocation4], %s27
      %s30 = sshll.u32 [#allocation5], 4
      %s31 = int_to_ptr.vmem [resolvable:$true] %s30
      %33 = dma.vmem_to_hbm [thread:$0]  %s31, 128, %s1, [#allocation4]
    $region13: #{tpu_custom_call.1} parent=1 // pred_fallthru
      _
    // Predicated region
    $region14: #{tpu_custom_call.1} parent=1 // pred_check
      _
    $region15: #{tpu_custom_call.1} parent=1 // pred_check_branch
      %35 = sbr.rel (0) target = $region17
    $region16: #{tpu_custom_call.1} parent=1 // pred_region
      %36 = dma.done [#allocation4], 128
    $region17: #{tpu_custom_call.1} parent=1 // pred_fallthru
      _
    %37 = vsyncpa [#allocation3], 1
    %38 = vsyncpa [#allocation4], 1

</llo_original>
